<compile_context>
chip_gen: v7x
topology: tpu7x:2x2x1
jax: 0.10.0
libtpu: 0.0.40
codegen_flags: <defaults>
</compile_context>

<pallas_src>
import jax
import jax.numpy as jnp
import numpy as np
from jax.experimental import pallas as pl
from jax.experimental.pallas import tpu as pltpu


def _softmax_axis0(x):
    # nn.Softmax(dim=1) on (n, hw, hw) == softmax over axis 0 of the per-batch
    # (hw, hw) matrix; it is per-column, hence local to a column tile.
    m = jnp.max(x, axis=0, keepdims=True)
    e = jnp.exp(x - m)
    return e * pl.reciprocal(jnp.sum(e, axis=0, keepdims=True), approx=True)


# ---------------------------------------------------------------------------
# Generation-aware VMEM budgeting / tile sizing
# ---------------------------------------------------------------------------
def _vmem_cap_bytes():
    try:
        return int(pltpu.get_tpu_info().vmem_capacity_bytes)
    except Exception:
        return 64 << 20          # conservative fallback (v7x physical VMEM per TC)


def _largest_tile(hw, max_cols):
    """Largest multiple of 128 dividing hw that is <= max_cols, preferring multiples
    of 256 (full MXU N width on v6e/v7x) unless that would halve the tile."""
    if hw % 128 != 0:
        return hw
    max_cols = max(int(max_cols), 128)
    best, best256 = 128, 0
    t, lim = 128, min(hw, max_cols)
    while t <= lim:
        if hw % t == 0:
            best = t
            if t % 256 == 0:
                best256 = t
        t += 128
    if best256 and 2 * best256 >= best:
        return best256
    return best


def _pick_stage1_tile(hw, c, num_s, cap_bytes):
    if hw % 128 != 0:
        return hw
    per_col = (2 * (2 * c * 4 + num_s * 6 + 3 * 4 + c * 2)     # 2x-buffered blocks
               + 2 * num_s * 4 + num_s * 2 + c * 6 + 16)        # live temporaries
    return _largest_tile(hw, max(cap_bytes // 3, 4 << 20) // per_col)


def _pick_stage2_tile(hw, c, num_s, cap_bytes):
    if hw % 128 != 0:
        return hw
    row_bytes = 2 * (c * hw * 2 + hw * num_s * 2 + 2 * hw * 4 + c * c * 2 + c * 4)
    per_col = 5 * hw * 4 + 2 * (2 * c * 4 + num_s * 2 + 3 * 4)
    budget = max(cap_bytes // 3 - row_bytes, 4 << 20)
    return _largest_tile(hw, budget // per_col)


def _stage1_vmem_estimate(c, num_s, tj1):
    two_buf = 2 * (2 * c * tj1 * 4                        # seg + edge column blocks
                   + num_s * tj1 * 4 + num_s * tj1 * 2    # theta_T (f32) + sigma (bf16)
                   + 3 * tj1 * 4                          # v, seg_ss, edge_mm
                   + c * tj1 * 2                          # bf16 copy of seg
                   + 2 * num_s * c * 2 + 3 * num_s * 4 + 16)
    temps = (2 * num_s * 4 + num_s * 2 + c * 6 + 16) * tj1
    return two_buf + temps


def _stage2_vmem_estimate(c, hw, num_s, tj):
    two_buf = 2 * (c * hw * 2                             # seg (bf16, full rows)
                   + hw * num_s * 2 + 2 * hw * 4          # sigma_T, u, edge_mm rows
                   + c * tj * 4                           # f32 residual columns
                   + 2 * tj * 4 + num_s * tj * 2          # v, seg_ss, sigma columns
                   + c * c * 2 + c * 4                    # wg (bf16), bg
                   + c * tj * 4)                          # output columns
    temps = 5 * hw * tj * 4 + hw * tj * 2 + 2 * c * tj * 4
    return two_buf + temps


def _compiler_params(semantics, est_bytes, cap_bytes):
    kwargs = dict(dimension_semantics=semantics)
    need = int(est_bytes * 1.3) + (1 << 20)
    if need > (16 << 20):        # smallest default scoped VMEM limit (v5e)
        kwargs["vmem_limit_bytes"] = int(min(max(need, 32 << 20), (cap_bytes * 3) // 4))
    return pltpu.CompilerParams(**kwargs)


# ---------------------------------------------------------------------------
# Stage 1: fused 1x1 convs (bf16 MXU), rank-1 column factor v, channel-max
#          pools + 1-channel 1x1 convs, bf16 copy of seg.  Fully column-local.
# ---------------------------------------------------------------------------
def _stage1_kernel(seg_ref, edge_ref, ca_ref, wcat_ref, b1_ref, b11_ref,
                   w2_ref, b2_ref, w3_ref, b3_ref,
                   theta_t_ref, sigma_ref, v_ref, segss_ref, edgemm_ref,
                   segbf_ref):
    num_s = b1_ref.shape[0]
    seg = seg_ref[0]                              # (c, tj1) f32
    seg_bf = seg.astype(jnp.bfloat16)

    # conv_s1 / conv_s11 share the same operand -> one bf16 MXU matmul (f32 acc).
    cat = jnp.dot(wcat_ref[...], seg_bf, preferred_element_type=jnp.float32)
    theta_t = cat[:num_s] + b1_ref[...]           # conv_s1   (num_s, tj1)
    sigma = cat[num_s:] + b11_ref[...]            # conv_s11  (num_s, tj1)

    # rank-1 column factor of theta (ca ca^T) theta_T:  v = ca^T @ theta_T.
    v_ref[0] = jnp.sum(ca_ref[0] * theta_t, axis=0, keepdims=True)

    # spatial-attention inputs: channel-max pools + 1-channel 1x1 convs.
    maxpool_s = jnp.max(seg, axis=0, keepdims=True)
    edge_m_pool = jnp.max(seg * edge_ref[0], axis=0, keepdims=True)
    segss_ref[0] = w2_ref[...] * maxpool_s + b2_ref[...]      # conv_s2
    edgemm_ref[0] = w3_ref[...] * edge_m_pool + b3_ref[...]   # conv_s3

    theta_t_ref[0] = theta_t
    sigma_ref[0] = sigma.astype(jnp.bfloat16)
    segbf_ref[0] = seg_bf


# ---------------------------------------------------------------------------
# Stage 2: column-tiled attention (rank-1 sim_c + spatial sim_s), per-column
#          softmaxes, and the GCN — all on (hw, TJ) slabs resident in VMEM.
# ---------------------------------------------------------------------------
def _stage2_kernel(segbf_ref, segc_ref, sigt_ref, u_ref, em_ref, v_ref,
                   sig_ref, ss_ref, wg_ref, bg_ref, out_ref):
    # channel-attention similarity (rank-1): softmax0(u v) columns.
    sim = _softmax_axis0(u_ref[0] * v_ref[0])                        # (hw, tj)

    # spatial-attention similarity, accumulated into the same slab (bf16 MXU).
    sigma_out = jnp.dot(sigt_ref[0], sig_ref[0],
                        preferred_element_type=jnp.float32)          # (hw, tj)
    sim = sim + _softmax_axis0((em_ref[0] * ss_ref[0]) * sigma_out)

    # GCN: relu(Wg (seg @ sim) + bg) + seg + seg_ori  ->  ... + 2 * seg.
    seg_sim = jnp.dot(segbf_ref[0], sim.astype(jnp.bfloat16),
                      preferred_element_type=jnp.float32)            # (c, tj)
    gcn = jnp.maximum(
        jnp.dot(wg_ref[...], seg_sim.astype(jnp.bfloat16),
                preferred_element_type=jnp.float32) + bg_ref[...], 0.0)
    out_ref[0] = gcn + 2.0 * segc_ref[0]


# ---------------------------------------------------------------------------
# Wrapper
# ---------------------------------------------------------------------------
def eagcn_forward(seg, edge, params, *, tj=None, tj1=None):
    n, c, h, w = seg.shape
    hw = h * w
    num_s = params["w1"].shape[0]
    f32, bf16 = jnp.float32, jnp.bfloat16

    # torch .view(n, num_state, -1).contiguous() on NCHW == row-major reshape.
    seg_f = seg.reshape(n, c, hw).astype(f32)
    edge_f = edge.reshape(n, c, hw).astype(f32)

    # channel attention ca = relu(Linear(avgpool(seg))): tiny (n, c) problem,
    # computed with XLA so stage 1 stays fully column-local (hw-tileable).
    pooled = jnp.mean(seg_f, axis=2)                                   # (n, c)
    ca = jax.nn.relu(pooled @ params["wm"].T + params["bm"][:, 0])     # (n, num_s)
    ca_col = ca[:, :, None]                                            # (n, num_s, 1)

    # conv_s1 / conv_s11 share the seg operand -> one stacked bf16 weight matrix.
    wcat_bf = jnp.concatenate([params["w1"], params["w11"]], axis=0).astype(bf16)
    wg_bf = params["wg"].astype(bf16)

    cap = _vmem_cap_bytes()
    if tj1 is None:
        tj1 = _pick_stage1_tile(hw, c, num_s, cap)
    if tj is None:
        tj = _pick_stage2_tile(hw, c, num_s, cap)
    assert hw % tj1 == 0 and hw % tj == 0, "column tiles must divide h*w"

    # ---------------- Stage 1 ----------------
    def cols1(s0):
        return pl.BlockSpec((1, s0, tj1), lambda b, j: (b, 0, j))

    def shared1(s0, s1):
        return pl.BlockSpec((s0, s1), lambda b, j: (0, 0))

    theta_t, sigma, v, segss, edgemm, seg_bf = pl.pallas_call(
        _stage1_kernel,
        out_shape=(
            jax.ShapeDtypeStruct((n, num_s, hw), f32),     # theta_T
            jax.ShapeDtypeStruct((n, num_s, hw), bf16),    # sigma
            jax.ShapeDtypeStruct((n, 1, hw), f32),         # v = ca^T @ theta_T
            jax.ShapeDtypeStruct((n, 1, hw), f32),         # seg_ss
            jax.ShapeDtypeStruct((n, 1, hw), f32),         # edge_mm
            jax.ShapeDtypeStruct((n, c, hw), bf16),        # seg (bf16 copy)
        ),
        grid=(n, hw // tj1),
        in_specs=[
            cols1(c), cols1(c),
            pl.BlockSpec((1, num_s, 1), lambda b, j: (b, 0, 0)),   # channel att
            shared1(2 * num_s, c),
            shared1(num_s, 1), shared1(num_s, 1),
            shared1(1, 1), shared1(1, 1), shared1(1, 1), shared1(1, 1),
        ],
        out_specs=(
            cols1(num_s), cols1(num_s), cols1(1), cols1(1), cols1(1), cols1(c),
        ),
        compiler_params=_compiler_params(
            ("parallel", "parallel"), _stage1_vmem_estimate(c, num_s, tj1), cap),
    )(seg_f, edge_f, ca_col, wcat_bf, params["b1"], params["b11"],
      params["w2"], params["b2"], params["w3"], params["b3"])

    # Glue: PyTorch's contiguous-view pseudo-transposes are row-major reshapes.
    sigma_t = sigma.reshape(n, hw, num_s)                    # seg_c.view(n, -1, num_s)
    theta = theta_t.reshape(n, hw, num_s)                    # seg_s.view(n, -1, num_s)
    u_col = jnp.einsum("nhs,ns->nh", theta, ca)[:, :, None]  # rank-1 row factor u
    edgemm_col = edgemm.reshape(n, hw, 1)                    # free (size-1 dim moves)

    # ---------------- Stage 2 ----------------
    def rows2(s0, s1):       # per-batch, column-invariant (re-DMA'd only per batch)
        return pl.BlockSpec((1, s0, s1), lambda b, j: (b, 0, 0))

    def cols2(s0):           # per-batch, column-tiled (lane-dense)
        return pl.BlockSpec((1, s0, tj), lambda b, j: (b, 0, j))

    def shared2(s0, s1):     # shared weights
        return pl.BlockSpec((s0, s1), lambda b, j: (0, 0))

    out_f = pl.pallas_call(
        _stage2_kernel,
        out_shape=jax.ShapeDtypeStruct((n, c, hw), f32),
        grid=(n, hw // tj),
        in_specs=[
            rows2(c, hw),          # seg (bf16, contraction operand)
            cols2(c),              # seg columns (f32 residual)
            rows2(hw, num_s),      # sigma_T rows (bf16)
            rows2(hw, 1),          # u rows
            rows2(hw, 1),          # edge_mm rows
            cols2(1),              # v columns
            cols2(num_s),          # sigma columns (bf16)
            cols2(1),              # seg_ss columns
            shared2(c, c),         # wg (bf16)
            shared2(c, 1),         # bg
        ],
        out_specs=cols2(c),
        compiler_params=_compiler_params(
            ("parallel", "parallel"), _stage2_vmem_estimate(c, hw, num_s, tj), cap),
    )(seg_bf, seg_f, sigma_t, u_col, edgemm_col, v, sigma, segss, wg_bf,
      params["bg"])

    return out_f.reshape(n, c, h, w)


# ---------------------------------------------------------------------------
# Deterministic parameter init (shapes follow EAGCN.__init__)
# ---------------------------------------------------------------------------
def init_params(key, num_in, num_s):
    ks = jax.random.split(key, 12)

    def nrm(k, shape, scale=0.1):
        return (scale * jax.random.normal(k, shape)).astype(jnp.float32)

    return {
        "w1": nrm(ks[0], (num_s, num_in)),   # conv_s1 (1x1)
        "b1": nrm(ks[1], (num_s, 1)),
        "w11": nrm(ks[2], (num_s, num_in)),  # conv_s11 (1x1)
        "b11": nrm(ks[3], (num_s, 1)),
        "wm": nrm(ks[4], (num_s, num_in)),   # mlp (Linear)
        "bm": nrm(ks[5], (num_s, 1)),
        "w2": nrm(ks[6], (1, 1)),            # conv_s2 (1x1, 1ch)
        "b2": nrm(ks[7], (1, 1)),
        "w3": nrm(ks[8], (1, 1)),            # conv_s3 (1x1, 1ch)
        "b3": nrm(ks[9], (1, 1)),
        "wg": nrm(ks[10], (num_in, num_in)),  # gcn.conv2 (Conv1d k=1)
        "bg": nrm(ks[11], (num_in, 1)),
    }


# ---------------------------------------------------------------------------
# Pure-JAX reference (mirrors the PyTorch forward exactly) for validation.
# ---------------------------------------------------------------------------
def eagcn_reference(seg, edge, params):
    n, c, h, w = seg.shape
    hw = h * w
    num_s = params["w1"].shape[0]
    seg_f = seg.reshape(n, c, hw)
    edge_f = edge.reshape(n, c, hw)

    seg_s = jnp.einsum("sc,nch->nsh", params["w1"], seg_f) + params["b1"][None]
    theta_t = seg_s
    theta = seg_s.reshape(n, hw, num_s)

    pooled = seg_f.mean(axis=2)
    ca = jax.nn.relu(pooled @ params["wm"].T + params["bm"][:, 0])
    diag_c = jnp.einsum("ns,nt->nst", ca, ca)
    sim_c = jnp.einsum("nhs,nst->nht", theta, diag_c)
    sim_c = jax.nn.softmax(jnp.einsum("nht,ntk->nhk", sim_c, theta_t), axis=1)

    seg_c = jnp.einsum("sc,nch->nsh", params["w11"], seg_f) + params["b11"][None]
    sigma = seg_c
    sigma_t = seg_c.reshape(n, hw, num_s)
    sigma_out = jnp.einsum("nhs,nsk->nhk", sigma_t, sigma)

    edge_m = seg_f * edge_f
    maxpool_s = seg_f.max(axis=1)
    edge_m_pool = edge_m.max(axis=1)
    segss = params["w2"][0, 0] * maxpool_s + params["b2"][0, 0]
    edgemm = params["w3"][0, 0] * edge_m_pool + params["b3"][0, 0]
    diag_s = edgemm[:, :, None] * segss[:, None, :] * sigma_out
    sim_s = jax.nn.softmax(diag_s, axis=1)

    similarity = sim_c + sim_s
    seg_similar = jnp.einsum("nch,nhk->nck", seg_f, similarity)
    gcn_out = jax.nn.relu(
        jnp.einsum("dc,nch->ndh", params["wg"], seg_similar) + params["bg"][None])
    out = gcn_out + seg_f + seg_f
    return out.reshape(n, c, h, w)


if __name__ == "__main__":
    key = jax.random.PRNGKey(0)
    n, num_in, h, w = 2, 8, 16, 16        # hw = 256 (mids = (16, 16))
    plane_mid = 8                          # num_s
    k1, k2, k3 = jax.random.split(key, 3)
    seg = jax.random.normal(k1, (n, num_in, h, w), dtype=jnp.float32)
    edge = jax.random.normal(k2, (n, num_in, h, w), dtype=jnp.float32)
    params = init_params(k3, num_in, plane_mid)

    # tj1=tj=128 -> two column tiles per stage, exercising the tiled paths.
    out = eagcn_forward(seg, edge, params, tj=128, tj1=128)
    out = jax.block_until_ready(out)

    ref = eagcn_reference(seg, edge, params)
    assert out.shape == seg.shape
    err = float(jnp.max(jnp.abs(out - ref)))
    assert np.isfinite(err) and err < 5e-2, f"mismatch vs reference: {err}"
    print("KERNEL_OK")
</pallas_src>

<mosaic_0001>
module attributes {stable_mosaic.version = 11 : i64} {
  func.func @_stage1_kernel(%arg0: i32, %arg1: i32, %arg2: memref<1x8x128xf32, #tpu.memory_space<vmem>>, %arg3: memref<1x8x128xf32, #tpu.memory_space<vmem>>, %arg4: memref<1x8x1xf32, #tpu.memory_space<vmem>>, %arg5: memref<16x8xbf16, #tpu.memory_space<vmem>>, %arg6: memref<8x1xf32, #tpu.memory_space<vmem>>, %arg7: memref<8x1xf32, #tpu.memory_space<vmem>>, %arg8: memref<1x1xf32, #tpu.memory_space<vmem>>, %arg9: memref<1x1xf32, #tpu.memory_space<vmem>>, %arg10: memref<1x1xf32, #tpu.memory_space<vmem>>, %arg11: memref<1x1xf32, #tpu.memory_space<vmem>>, %arg12: memref<1x8x128xf32, #tpu.memory_space<vmem>>, %arg13: memref<1x8x128xbf16, #tpu.memory_space<vmem>>, %arg14: memref<1x1x128xf32, #tpu.memory_space<vmem>>, %arg15: memref<1x1x128xf32, #tpu.memory_space<vmem>>, %arg16: memref<1x1x128xf32, #tpu.memory_space<vmem>>, %arg17: memref<1x8x128xbf16, #tpu.memory_space<vmem>>) attributes {dimension_semantics = [#tpu.dimension_semantics<parallel>, #tpu.dimension_semantics<parallel>], iteration_bounds = array<i64: 2, 2>, scalar_prefetch = 0 : i64, scratch_operands = 0 : i64, tpu.core_type = #tpu.core_type<tc>, window_params = [{transform_indices = @transform_0, window_bounds = array<i64: 1, 8, 128>}, {transform_indices = @transform_1, window_bounds = array<i64: 1, 8, 128>}, {transform_indices = @transform_2, window_bounds = array<i64: 1, 8, 1>}, {pipeline_mode = #tpu.pipeline_mode<synchronous>, transform_indices = @transform_3, window_bounds = array<i64: 16, 8>}, {pipeline_mode = #tpu.pipeline_mode<synchronous>, transform_indices = @transform_4, window_bounds = array<i64: 8, 1>}, {pipeline_mode = #tpu.pipeline_mode<synchronous>, transform_indices = @transform_5, window_bounds = array<i64: 8, 1>}, {pipeline_mode = #tpu.pipeline_mode<synchronous>, transform_indices = @transform_6, window_bounds = array<i64: 1, 1>}, {pipeline_mode = #tpu.pipeline_mode<synchronous>, transform_indices = @transform_7, window_bounds = array<i64: 1, 1>}, {pipeline_mode = #tpu.pipeline_mode<synchronous>, transform_indices = @transform_8, window_bounds = array<i64: 1, 1>}, {pipeline_mode = #tpu.pipeline_mode<synchronous>, transform_indices = @transform_9, window_bounds = array<i64: 1, 1>}, {transform_indices = @transform_10, window_bounds = array<i64: 1, 8, 128>}, {transform_indices = @transform_11, window_bounds = array<i64: 1, 8, 128>}, {transform_indices = @transform_12, window_bounds = array<i64: 1, 1, 128>}, {transform_indices = @transform_13, window_bounds = array<i64: 1, 1, 128>}, {transform_indices = @transform_14, window_bounds = array<i64: 1, 1, 128>}, {transform_indices = @transform_15, window_bounds = array<i64: 1, 8, 128>}]} {
    %c0 = arith.constant 0 : index
    %c0_0 = arith.constant 0 : index
    %c0_1 = arith.constant 0 : index
    %0 = vector.load %arg2[%c0, %c0_0, %c0_1] : memref<1x8x128xf32, #tpu.memory_space<vmem>>, vector<1x8x128xf32>
    %1 = vector.shape_cast %0 : vector<1x8x128xf32> to vector<8x128xf32>
    %2 = arith.truncf %1 : vector<8x128xf32> to vector<8x128xbf16>
    %c0_2 = arith.constant 0 : index
    %c0_3 = arith.constant 0 : index
    %3 = vector.load %arg5[%c0_2, %c0_3] : memref<16x8xbf16, #tpu.memory_space<vmem>>, vector<16x8xbf16>
    %cst = arith.constant dense<0.000000e+00> : vector<16x128xf32>
    %4 = tpu.matmul %3, %2, %cst {dimension_numbers = #tpu.dot_dimension_numbers<[1], [0], [0], [1], [0, 0, 1, 1], [], []>} : vector<16x8xbf16>, vector<8x128xbf16>, vector<16x128xf32> -> vector<16x128xf32>
    %5 = vector.extract_strided_slice %4 {offsets = [0, 0], sizes = [8, 128], strides = [1, 1]} : vector<16x128xf32> to vector<8x128xf32>
    %c0_4 = arith.constant 0 : index
    %c0_5 = arith.constant 0 : index
    %6 = vector.load %arg6[%c0_4, %c0_5] : memref<8x1xf32, #tpu.memory_space<vmem>>, vector<8x1xf32>
    %7 = vector.broadcast %6 : vector<8x1xf32> to vector<8x128xf32>
    %8 = arith.addf %5, %7 : vector<8x128xf32>
    %9 = vector.extract_strided_slice %4 {offsets = [8, 0], sizes = [8, 128], strides = [1, 1]} : vector<16x128xf32> to vector<8x128xf32>
    %c0_6 = arith.constant 0 : index
    %c0_7 = arith.constant 0 : index
    %10 = vector.load %arg7[%c0_6, %c0_7] : memref<8x1xf32, #tpu.memory_space<vmem>>, vector<8x1xf32>
    %11 = vector.broadcast %10 : vector<8x1xf32> to vector<8x128xf32>
    %12 = arith.addf %9, %11 : vector<8x128xf32>
    %c0_8 = arith.constant 0 : index
    %c0_9 = arith.constant 0 : index
    %c0_10 = arith.constant 0 : index
    %13 = vector.load %arg4[%c0_8, %c0_9, %c0_10] : memref<1x8x1xf32, #tpu.memory_space<vmem>>, vector<1x8x1xf32>
    %14 = vector.shape_cast %13 : vector<1x8x1xf32> to vector<8x1xf32>
    %15 = vector.broadcast %14 : vector<8x1xf32> to vector<8x128xf32>
    %16 = arith.mulf %15, %8 : vector<8x128xf32>
    %cst_11 = arith.constant dense<0.000000e+00> : vector<128xf32>
    %17 = vector.multi_reduction <add>, %16, %cst_11 [0] : vector<8x128xf32> to vector<128xf32>
    %18 = vector.shape_cast %17 : vector<128xf32> to vector<1x128xf32>
    %c0_12 = arith.constant 0 : index
    %c0_13 = arith.constant 0 : index
    %c0_14 = arith.constant 0 : index
    %19 = vector.load %arg14[%c0_12, %c0_13, %c0_14] : memref<1x1x128xf32, #tpu.memory_space<vmem>>, vector<1x1x128xf32>
    %20 = vector.shape_cast %19 : vector<1x1x128xf32> to vector<1x128xf32>
    %21 = vector.shape_cast %18 : vector<1x128xf32> to vector<1x1x128xf32>
    tpu.vector_store %arg14[%c0_12, %c0_13, %c0_14], %21 {strides = array<i32>} : memref<1x1x128xf32, #tpu.memory_space<vmem>>, vector<1x1x128xf32>,
    %cst_15 = arith.constant dense<0xFF800000> : vector<128xf32>
    %22 = vector.multi_reduction <maximumf>, %1, %cst_15 [0] : vector<8x128xf32> to vector<128xf32>
    %23 = vector.shape_cast %22 : vector<128xf32> to vector<1x128xf32>
    %c0_16 = arith.constant 0 : index
    %c0_17 = arith.constant 0 : index
    %c0_18 = arith.constant 0 : index
    %24 = vector.load %arg3[%c0_16, %c0_17, %c0_18] : memref<1x8x128xf32, #tpu.memory_space<vmem>>, vector<1x8x128xf32>
    %25 = vector.shape_cast %24 : vector<1x8x128xf32> to vector<8x128xf32>
    %26 = arith.mulf %1, %25 : vector<8x128xf32>
    %cst_19 = arith.constant dense<0xFF800000> : vector<128xf32>
    %27 = vector.multi_reduction <maximumf>, %26, %cst_19 [0] : vector<8x128xf32> to vector<128xf32>
    %28 = vector.shape_cast %27 : vector<128xf32> to vector<1x128xf32>
    %c0_20 = arith.constant 0 : index
    %c0_21 = arith.constant 0 : index
    %29 = vector.load %arg8[%c0_20, %c0_21] : memref<1x1xf32, #tpu.memory_space<vmem>>, vector<1x1xf32>
    %30 = vector.broadcast %29 : vector<1x1xf32> to vector<1x128xf32>
    %31 = arith.mulf %30, %23 : vector<1x128xf32>
    %c0_22 = arith.constant 0 : index
    %c0_23 = arith.constant 0 : index
    %32 = vector.load %arg9[%c0_22, %c0_23] : memref<1x1xf32, #tpu.memory_space<vmem>>, vector<1x1xf32>
    %33 = vector.broadcast %32 : vector<1x1xf32> to vector<1x128xf32>
    %34 = arith.addf %31, %33 : vector<1x128xf32>
    %c0_24 = arith.constant 0 : index
    %c0_25 = arith.constant 0 : index
    %c0_26 = arith.constant 0 : index
    %35 = vector.load %arg15[%c0_24, %c0_25, %c0_26] : memref<1x1x128xf32, #tpu.memory_space<vmem>>, vector<1x1x128xf32>
    %36 = vector.shape_cast %35 : vector<1x1x128xf32> to vector<1x128xf32>
    %37 = vector.shape_cast %34 : vector<1x128xf32> to vector<1x1x128xf32>
    tpu.vector_store %arg15[%c0_24, %c0_25, %c0_26], %37 {strides = array<i32>} : memref<1x1x128xf32, #tpu.memory_space<vmem>>, vector<1x1x128xf32>,
    %c0_27 = arith.constant 0 : index
    %c0_28 = arith.constant 0 : index
    %38 = vector.load %arg10[%c0_27, %c0_28] : memref<1x1xf32, #tpu.memory_space<vmem>>, vector<1x1xf32>
    %39 = vector.broadcast %38 : vector<1x1xf32> to vector<1x128xf32>
    %40 = arith.mulf %39, %28 : vector<1x128xf32>
    %c0_29 = arith.constant 0 : index
    %c0_30 = arith.constant 0 : index
    %41 = vector.load %arg11[%c0_29, %c0_30] : memref<1x1xf32, #tpu.memory_space<vmem>>, vector<1x1xf32>
    %42 = vector.broadcast %41 : vector<1x1xf32> to vector<1x128xf32>
    %43 = arith.addf %40, %42 : vector<1x128xf32>
    %c0_31 = arith.constant 0 : index
    %c0_32 = arith.constant 0 : index
    %c0_33 = arith.constant 0 : index
    %44 = vector.load %arg16[%c0_31, %c0_32, %c0_33] : memref<1x1x128xf32, #tpu.memory_space<vmem>>, vector<1x1x128xf32>
    %45 = vector.shape_cast %44 : vector<1x1x128xf32> to vector<1x128xf32>
    %46 = vector.shape_cast %43 : vector<1x128xf32> to vector<1x1x128xf32>
    tpu.vector_store %arg16[%c0_31, %c0_32, %c0_33], %46 {strides = array<i32>} : memref<1x1x128xf32, #tpu.memory_space<vmem>>, vector<1x1x128xf32>,
    %c0_34 = arith.constant 0 : index
    %c0_35 = arith.constant 0 : index
    %c0_36 = arith.constant 0 : index
    %47 = vector.load %arg12[%c0_34, %c0_35, %c0_36] : memref<1x8x128xf32, #tpu.memory_space<vmem>>, vector<1x8x128xf32>
    %48 = vector.shape_cast %47 : vector<1x8x128xf32> to vector<8x128xf32>
    %49 = vector.shape_cast %8 : vector<8x128xf32> to vector<1x8x128xf32>
    tpu.vector_store %arg12[%c0_34, %c0_35, %c0_36], %49 {strides = array<i32>} : memref<1x8x128xf32, #tpu.memory_space<vmem>>, vector<1x8x128xf32>,
    %50 = arith.truncf %12 : vector<8x128xf32> to vector<8x128xbf16>
    %c0_37 = arith.constant 0 : index
    %c0_38 = arith.constant 0 : index
    %c0_39 = arith.constant 0 : index
    %51 = vector.load %arg13[%c0_37, %c0_38, %c0_39] : memref<1x8x128xbf16, #tpu.memory_space<vmem>>, vector<1x8x128xbf16>
    %52 = vector.shape_cast %51 : vector<1x8x128xbf16> to vector<8x128xbf16>
    %53 = vector.shape_cast %50 : vector<8x128xbf16> to vector<1x8x128xbf16>
    tpu.vector_store %arg13[%c0_37, %c0_38, %c0_39], %53 {strides = array<i32>} : memref<1x8x128xbf16, #tpu.memory_space<vmem>>, vector<1x8x128xbf16>,
    %c0_40 = arith.constant 0 : index
    %c0_41 = arith.constant 0 : index
    %c0_42 = arith.constant 0 : index
    %54 = vector.load %arg17[%c0_40, %c0_41, %c0_42] : memref<1x8x128xbf16, #tpu.memory_space<vmem>>, vector<1x8x128xbf16>
    %55 = vector.shape_cast %54 : vector<1x8x128xbf16> to vector<8x128xbf16>
    %56 = vector.shape_cast %2 : vector<8x128xbf16> to vector<1x8x128xbf16>
    tpu.vector_store %arg17[%c0_40, %c0_41, %c0_42], %56 {strides = array<i32>} : memref<1x8x128xbf16, #tpu.memory_space<vmem>>, vector<1x8x128xbf16>,
    return
  }
  func.func @transform_0(%arg0: i32, %arg1: i32) -> (i32, i32, i32) {
    %c0_i32 = arith.constant 0 : i32
    %c0_i32_0 = arith.constant 0 : i32
    return %arg0, %c0_i32, %arg1 : i32, i32, i32
  }
  func.func @transform_1(%arg0: i32, %arg1: i32) -> (i32, i32, i32) {
    %c0_i32 = arith.constant 0 : i32
    %c0_i32_0 = arith.constant 0 : i32
    return %arg0, %c0_i32, %arg1 : i32, i32, i32
  }
  func.func @transform_2(%arg0: i32, %arg1: i32) -> (i32, i32, i32) {
    %c0_i32 = arith.constant 0 : i32
    %c0_i32_0 = arith.constant 0 : i32
    %c0_i32_1 = arith.constant 0 : i32
    return %arg0, %c0_i32, %c0_i32_0 : i32, i32, i32
  }
  func.func @transform_3(%arg0: i32, %arg1: i32) -> (i32, i32) {
    %c0_i32 = arith.constant 0 : i32
    %c0_i32_0 = arith.constant 0 : i32
    %c0_i32_1 = arith.constant 0 : i32
    return %c0_i32, %c0_i32_0 : i32, i32
  }
  func.func @transform_4(%arg0: i32, %arg1: i32) -> (i32, i32) {
    %c0_i32 = arith.constant 0 : i32
    %c0_i32_0 = arith.constant 0 : i32
    %c0_i32_1 = arith.constant 0 : i32
    return %c0_i32, %c0_i32_0 : i32, i32
  }
  func.func @transform_5(%arg0: i32, %arg1: i32) -> (i32, i32) {
    %c0_i32 = arith.constant 0 : i32
    %c0_i32_0 = arith.constant 0 : i32
    %c0_i32_1 = arith.constant 0 : i32
    return %c0_i32, %c0_i32_0 : i32, i32
  }
  func.func @transform_6(%arg0: i32, %arg1: i32) -> (i32, i32) {
    %c0_i32 = arith.constant 0 : i32
    %c0_i32_0 = arith.constant 0 : i32
    %c0_i32_1 = arith.constant 0 : i32
    return %c0_i32, %c0_i32_0 : i32, i32
  }
  func.func @transform_7(%arg0: i32, %arg1: i32) -> (i32, i32) {
    %c0_i32 = arith.constant 0 : i32
    %c0_i32_0 = arith.constant 0 : i32
    %c0_i32_1 = arith.constant 0 : i32
    return %c0_i32, %c0_i32_0 : i32, i32
  }
  func.func @transform_8(%arg0: i32, %arg1: i32) -> (i32, i32) {
    %c0_i32 = arith.constant 0 : i32
    %c0_i32_0 = arith.constant 0 : i32
    %c0_i32_1 = arith.constant 0 : i32
    return %c0_i32, %c0_i32_0 : i32, i32
  }
  func.func @transform_9(%arg0: i32, %arg1: i32) -> (i32, i32) {
    %c0_i32 = arith.constant 0 : i32
    %c0_i32_0 = arith.constant 0 : i32
    %c0_i32_1 = arith.constant 0 : i32
    return %c0_i32, %c0_i32_0 : i32, i32
  }
  func.func @transform_10(%arg0: i32, %arg1: i32) -> (i32, i32, i32) {
    %c0_i32 = arith.constant 0 : i32
    %c0_i32_0 = arith.constant 0 : i32
    return %arg0, %c0_i32, %arg1 : i32, i32, i32
  }
  func.func @transform_11(%arg0: i32, %arg1: i32) -> (i32, i32, i32) {
    %c0_i32 = arith.constant 0 : i32
    %c0_i32_0 = arith.constant 0 : i32
    return %arg0, %c0_i32, %arg1 : i32, i32, i32
  }
  func.func @transform_12(%arg0: i32, %arg1: i32) -> (i32, i32, i32) {
    %c0_i32 = arith.constant 0 : i32
    %c0_i32_0 = arith.constant 0 : i32
    return %arg0, %c0_i32, %arg1 : i32, i32, i32
  }
  func.func @transform_13(%arg0: i32, %arg1: i32) -> (i32, i32, i32) {
    %c0_i32 = arith.constant 0 : i32
    %c0_i32_0 = arith.constant 0 : i32
    return %arg0, %c0_i32, %arg1 : i32, i32, i32
  }
  func.func @transform_14(%arg0: i32, %arg1: i32) -> (i32, i32, i32) {
    %c0_i32 = arith.constant 0 : i32
    %c0_i32_0 = arith.constant 0 : i32
    return %arg0, %c0_i32, %arg1 : i32, i32, i32
  }
  func.func @transform_15(%arg0: i32, %arg1: i32) -> (i32, i32, i32) {
    %c0_i32 = arith.constant 0 : i32
    %c0_i32_0 = arith.constant 0 : i32
    return %arg0, %c0_i32, %arg1 : i32, i32, i32
  }
}

</mosaic_0001>

<llo_original>
// kernel: tpu_custom_call.1
$region0: #{tpu_custom_call.1}
  #allocation0 [shape = 'u32[]', space=smem, size = 0x4, offset = 0x4, fixed_abs, tag = 'smem constant byte address 0x4 - core index']
  #allocation1 [shape = 'u32[144,128]{1,0:T(1,128)}', space=vmem, size = 0x12000, scoped, tag = 'internal scratch']
  #allocation2 [shape = 'f32[1,1]{1,0:T(1,128)S(1)}', space=vmem, size = 0x200, scoped, tag = 'scoped memory for tpu_custom_call.1']
  #allocation3 [shape = 'f32[1,1]{1,0:T(1,128)S(1)}', space=vmem, size = 0x200, scoped, tag = 'scoped memory for tpu_custom_call.1']
  #allocation4 [shape = 'f32[1,1]{1,0:T(1,128)S(1)}', space=vmem, size = 0x200, scoped, tag = 'scoped memory for tpu_custom_call.1']
  #allocation5 [shape = 'f32[1,1]{1,0:T(1,128)S(1)}', space=vmem, size = 0x200, scoped, tag = 'scoped memory for tpu_custom_call.1']
  %s0 = inlined_call_operand.vmem [shape: f32[2,8,256], index: 0, kind: input, shape index: {}]
  %s1 = inlined_call_operand.vmem [shape: f32[2,8,256], index: 1, kind: input, shape index: {}]
  %s2 = inlined_call_operand.vmem [shape: f32[2,8,1], index: 2, kind: input, shape index: {}]
  %s3 = inlined_call_operand.vmem [shape: bf16[16,8], index: 3, kind: input, shape index: {}]
  %s4 = inlined_call_operand.vmem [shape: f32[8,1], index: 4, kind: input, shape index: {}]
  %s5 = inlined_call_operand.vmem [shape: f32[8,1], index: 5, kind: input, shape index: {}]
  %s6 = inlined_call_operand.<no memory space> [shape: f32[1,1], index: 6, kind: input, shape index: {}]
  %s7 = inlined_call_operand.<no memory space> [shape: f32[1,1], index: 7, kind: input, shape index: {}]
  %s8 = inlined_call_operand.<no memory space> [shape: f32[1,1], index: 8, kind: input, shape index: {}]
  %s9 = inlined_call_operand.<no memory space> [shape: f32[1,1], index: 9, kind: input, shape index: {}]
  %s10 = inlined_call_operand.hbm [shape: f32[2,8,256], index: 10, kind: output, shape index: {0}]
  %s11 = inlined_call_operand.hbm [shape: bf16[2,8,256], index: 11, kind: output, shape index: {1}]
  %s12 = inlined_call_operand.hbm [shape: f32[2,1,256], index: 12, kind: output, shape index: {2}]
  %s13 = inlined_call_operand.hbm [shape: f32[2,1,256], index: 13, kind: output, shape index: {3}]
  %s14 = inlined_call_operand.hbm [shape: f32[2,1,256], index: 14, kind: output, shape index: {4}]
  %s15 = inlined_call_operand.hbm [shape: bf16[2,8,256], index: 15, kind: output, shape index: {5}]
  %16 = xla_tuple %s10, %s11, %s12, %s13, %s14, %s15
  %s17 = sld [smem:[#allocation0]]
  $region113: #{tpu_custom_call.1} parent=0
    _
  %s19 = ssub.s32 1, %s17
  %s20 = scalar_select 0, %s19, %s17
  %v21 = vstv %s6
  %22 = vst [vmem:[#allocation2] sm:$0x1] %v21
  %v23 = vstv %s7
  %24 = vst [vmem:[#allocation3] sm:$0x1] %v23
  %v25 = vstv %s8
  %26 = vst [vmem:[#allocation4] sm:$0x1] %v25
  %v27 = vstv %s9
  %28 = vst [vmem:[#allocation5] sm:$0x1] %v27
  $region1: #{tpu_custom_call.1} parent=0
    #allocation6 [shape = 'u8[8192]{0}', space=vmem, size = 0x2000, scoped, tag = 'output window, operand 0']
    #allocation7 [shape = 's32[2]{0}', space=sflag, size = 0x8, scoped, tag = 'scoped memory for tpu_custom_call.1']
    #allocation8 [shape = 'u8[4096]{0}', space=vmem, size = 0x1000, scoped, tag = 'output window, operand 1']
    #allocation9 [shape = 's32[2]{0}', space=sflag, size = 0x8, scoped, tag = 'scoped memory for tpu_custom_call.1']
    #allocation10 [shape = 'u8[1024]{0}', space=vmem, size = 0x400, scoped, tag = 'output window, operand 2']
    #allocation11 [shape = 'u8[1024]{0}', space=vmem, size = 0x400, scoped, tag = 'output window, operand 3']
    #allocation12 [shape = 's32[2]{0}', space=sflag, size = 0x8, scoped, tag = 'scoped memory for tpu_custom_call.1']
    #allocation13 [shape = 'u8[1024]{0}', space=vmem, size = 0x400, scoped, tag = 'output window, operand 4']
    #allocation14 [shape = 'u8[4096]{0}', space=vmem, size = 0x1000, scoped, tag = 'output window, operand 5']
    #allocation15 [shape = 's32[2]{0}', space=sflag, size = 0x8, scoped, tag = 'scoped memory for tpu_custom_call.1']
    %29 = vsyncpa [#allocation7], 0
    %s30 = scalar_lea.sflag [#allocation7], 1
    %31 = vsyncpa %s30, 0
    %32 = vsyncpa [#allocation9], 0
    %s33 = scalar_lea.sflag [#allocation9], 1
    %34 = vsyncpa %s33, 0
    %35 = vsyncpa [#allocation12], 0
    %s36 = scalar_lea.sflag [#allocation12], 1
    %37 = vsyncpa %s36, 0
    %38 = vsyncpa [#allocation15], 0
    %s39 = scalar_lea.sflag [#allocation15], 1
    %40 = vsyncpa %s39, 0
    loop: start=0, step=1, limit=6
    $region2: #{tpu_custom_call.1} parent=1 // loop_pre_header
      _
    $region3: #{tpu_custom_call.1} parent=1 // loop_header
      %s42 = sphi 0, %s46
      %p43 = scmp.ge.s32.totalorder %s42, 6
      %s49 = sphi 0, %s61
      %s50 = sphi 0, %s57
      %s51 = sphi 0, %s49
      %s52 = sphi 0, %s50
      %s53 = sphi 0, %s51
      %s54 = sphi 0, %s52
      %s66 = sphi 0, %s68
      %s69 = sphi 0, %s66
      %s70 = sphi 0, %s69
      %s86 = sphi 0, %s70
      %s94 = sphi 0, %s96
      %s97 = sphi 0, %s94
      %s98 = sphi 0, %s97
      %s114 = sphi 0, %s98
      %s120 = sphi 0, %s122
      %s123 = sphi 0, %s120
      %s124 = sphi 0, %s123
      %s140 = sphi 0, %s124
      %s144 = sphi 0, %s144
      %s146 = sphi 0, %s144
      %s147 = sphi 0, %s146
      %s161 = sphi 0, %s147
      %s165 = sphi 0, %s165
      %s167 = sphi 0, %s165
      %s168 = sphi 0, %s167
      %s182 = sphi 0, %s168
      %s186 = sphi 0, %s186
      %s188 = sphi 0, %s186
      %s189 = sphi 0, %s188
      %s203 = sphi 0, %s189
      %s207 = sphi 0, %s207
      %s209 = sphi 0, %s207
      %s210 = sphi 0, %s209
      %s224 = sphi 0, %s210
      %s228 = sphi 0, %s228
      %s230 = sphi 0, %s228
      %s231 = sphi 0, %s230
      %s245 = sphi 0, %s231
      %s249 = sphi 0, %s249
      %s251 = sphi 0, %s249
      %s252 = sphi 0, %s251
      %s266 = sphi 0, %s252
      %s270 = sphi 0, %s270
      %s272 = sphi 0, %s270
      %s273 = sphi 0, %s272
      %s287 = sphi 0, %s273
      %s295 = sphi 0, %s297
      %s298 = sphi 0, %s295
      %s299 = sphi 0, %s298
      %s315 = sphi 0, %s299
      %s323 = sphi 0, %s325
      %s326 = sphi 0, %s323
      %s327 = sphi 0, %s326
      %s343 = sphi 0, %s327
      %s351 = sphi 0, %s353
      %s354 = sphi 0, %s351
      %s355 = sphi 0, %s354
      %s371 = sphi 0, %s355
      %s379 = sphi 0, %s381
      %s382 = sphi 0, %s379
      %s383 = sphi 0, %s382
      %s399 = sphi 0, %s383
      %s407 = sphi 0, %s409
      %s410 = sphi 0, %s407
      %s411 = sphi 0, %s410
      %s427 = sphi 0, %s411
      %s435 = sphi 0, %s437
      %s438 = sphi 0, %s435
      %s439 = sphi 0, %s438
      %s455 = sphi 0, %s439
    $region4: #{tpu_custom_call.1} parent=1 // loop_header_branch
      %45 = sbr.rel (%p43) target = $region8
    $region5: #{tpu_custom_call.1} parent=1 // loop_body
      %s47 = ssub.s32 %s42, 1
      %s48 = ssub.s32 %s42, 2
      %s55 = sadd.s32 1, %s50
      %p56 = scmp.ge.s32.totalorder %s55, 2
      %s57 = scalar_select %p56, 0, %s55
      %s58 = sadd.s32 1, %s49
      %s59 = scalar_select %p56, %s58, %s49
      %p60 = scmp.ge.s32.totalorder %s59, 2
      %s61 = scalar_select %p60, 0, %s59
      %s62 = ssub.s32 %s49, %s61
      %s63 = ssub.s32 %s50, %s57
      %s64 = sor.u32 %s62, %s63
      %p65 = scmp.eq.s32.totalorder %s64, 0
      %s67 = sadd.s32 %s66, 1
      %s68 = scalar_select %p65, %s66, %s67
      %p71 = pneg %p65
      %p72 = scmp.eq.s32.totalorder %s42, 3
      %p73 = por %p71, %p72
      %p74 = scmp.ne.s32.totalorder %s66, %s69
      %p75 = scmp.eq.s32.totalorder %s42, 0
      %p76 = por %p74, %p75
      %p77 = scmp.ne.s32.totalorder %s66, %s69
      %p78 = scmp.eq.s32.totalorder %s47, 3
      %p79 = por %p77, %p78
      %p80 = scmp.ne.s32.totalorder %s69, %s70
      %p81 = scmp.eq.s32.totalorder %s47, 0
      %p82 = por %p80, %p81
      %p83 = scmp.ne.s32.totalorder %s69, %s70
      %p84 = scmp.eq.s32.totalorder %s48, 3
      %p85 = por %p83, %p84
      %p87 = scmp.ne.s32.totalorder %s70, %s86
      %p88 = scmp.eq.s32.totalorder %s48, 0
      %p89 = por %p87, %p88
      %s90 = ssub.s32 %s49, %s61
      %s91 = ssub.s32 %s50, %s57
      %s92 = sor.u32 %s90, %s91
      %p93 = scmp.eq.s32.totalorder %s92, 0
      %s95 = sadd.s32 %s94, 1
      %s96 = scalar_select %p93, %s94, %s95
      %p99 = pneg %p93
      %p100 = scmp.eq.s32.totalorder %s42, 3
      %p101 = por %p99, %p100
      %p102 = scmp.ne.s32.totalorder %s94, %s97
      %p103 = scmp.eq.s32.totalorder %s42, 0
      %p104 = por %p102, %p103
      %p105 = scmp.ne.s32.totalorder %s94, %s97
      %p106 = scmp.eq.s32.totalorder %s47, 3
      %p107 = por %p105, %p106
      %p108 = scmp.ne.s32.totalorder %s97, %s98
      %p109 = scmp.eq.s32.totalorder %s47, 0
      %p110 = por %p108, %p109
      %p111 = scmp.ne.s32.totalorder %s97, %s98
      %p112 = scmp.eq.s32.totalorder %s48, 3
      %p113 = por %p111, %p112
      %p115 = scmp.ne.s32.totalorder %s98, %s114
      %p116 = scmp.eq.s32.totalorder %s48, 0
      %p117 = por %p115, %p116
      %s118 = ssub.s32 %s49, %s61
      %p119 = scmp.eq.s32.totalorder %s118, 0
      %s121 = sadd.s32 %s120, 1
      %s122 = scalar_select %p119, %s120, %s121
      %p125 = pneg %p119
      %p126 = scmp.eq.s32.totalorder %s42, 3
      %p127 = por %p125, %p126
      %p128 = scmp.ne.s32.totalorder %s120, %s123
      %p129 = scmp.eq.s32.totalorder %s42, 0
      %p130 = por %p128, %p129
      %p131 = scmp.ne.s32.totalorder %s120, %s123
      %p132 = scmp.eq.s32.totalorder %s47, 3
      %p133 = por %p131, %p132
      %p134 = scmp.ne.s32.totalorder %s123, %s124
      %p135 = scmp.eq.s32.totalorder %s47, 0
      %p136 = por %p134, %p135
      %p137 = scmp.ne.s32.totalorder %s123, %s124
      %p138 = scmp.eq.s32.totalorder %s48, 3
      %p139 = por %p137, %p138
      %p141 = scmp.ne.s32.totalorder %s124, %s140
      %p142 = scmp.eq.s32.totalorder %s48, 0
      %p143 = por %p141, %p142
      %s145 = sadd.s32 %s144, 1
      %p148 = scmp.eq.s32.totalorder %s42, 3
      %p149 = scmp.ne.s32.totalorder %s144, %s146
      %p150 = scmp.eq.s32.totalorder %s42, 0
      %p151 = por %p149, %p150
      %p152 = scmp.ne.s32.totalorder %s144, %s146
      %p153 = scmp.eq.s32.totalorder %s47, 3
      %p154 = por %p152, %p153
      %p155 = scmp.ne.s32.totalorder %s146, %s147
      %p156 = scmp.eq.s32.totalorder %s47, 0
      %p157 = por %p155, %p156
      %p158 = scmp.ne.s32.totalorder %s146, %s147
      %p159 = scmp.eq.s32.totalorder %s48, 3
      %p160 = por %p158, %p159
      %p162 = scmp.ne.s32.totalorder %s147, %s161
      %p163 = scmp.eq.s32.totalorder %s48, 0
      %p164 = por %p162, %p163
      %s166 = sadd.s32 %s165, 1
      %p169 = scmp.eq.s32.totalorder %s42, 3
      %p170 = scmp.ne.s32.totalorder %s165, %s167
      %p171 = scmp.eq.s32.totalorder %s42, 0
      %p172 = por %p170, %p171
      %p173 = scmp.ne.s32.totalorder %s165, %s167
      %p174 = scmp.eq.s32.totalorder %s47, 3
      %p175 = por %p173, %p174
      %p176 = scmp.ne.s32.totalorder %s167, %s168
      %p177 = scmp.eq.s32.totalorder %s47, 0
      %p178 = por %p176, %p177
      %p179 = scmp.ne.s32.totalorder %s167, %s168
      %p180 = scmp.eq.s32.totalorder %s48, 3
      %p181 = por %p179, %p180
      %p183 = scmp.ne.s32.totalorder %s168, %s182
      %p184 = scmp.eq.s32.totalorder %s48, 0
      %p185 = por %p183, %p184
      %s187 = sadd.s32 %s186, 1
      %p190 = scmp.eq.s32.totalorder %s42, 3
      %p191 = scmp.ne.s32.totalorder %s186, %s188
      %p192 = scmp.eq.s32.totalorder %s42, 0
      %p193 = por %p191, %p192
      %p194 = scmp.ne.s32.totalorder %s186, %s188
      %p195 = scmp.eq.s32.totalorder %s47, 3
      %p196 = por %p194, %p195
      %p197 = scmp.ne.s32.totalorder %s188, %s189
      %p198 = scmp.eq.s32.totalorder %s47, 0
      %p199 = por %p197, %p198
      %p200 = scmp.ne.s32.totalorder %s188, %s189
      %p201 = scmp.eq.s32.totalorder %s48, 3
      %p202 = por %p200, %p201
      %p204 = scmp.ne.s32.totalorder %s189, %s203
      %p205 = scmp.eq.s32.totalorder %s48, 0
      %p206 = por %p204, %p205
      %s208 = sadd.s32 %s207, 1
      %p211 = scmp.eq.s32.totalorder %s42, 3
      %p212 = scmp.ne.s32.totalorder %s207, %s209
      %p213 = scmp.eq.s32.totalorder %s42, 0
      %p214 = por %p212, %p213
      %p215 = scmp.ne.s32.totalorder %s207, %s209
      %p216 = scmp.eq.s32.totalorder %s47, 3
      %p217 = por %p215, %p216
      %p218 = scmp.ne.s32.totalorder %s209, %s210
      %p219 = scmp.eq.s32.totalorder %s47, 0
      %p220 = por %p218, %p219
      %p221 = scmp.ne.s32.totalorder %s209, %s210
      %p222 = scmp.eq.s32.totalorder %s48, 3
      %p223 = por %p221, %p222
      %p225 = scmp.ne.s32.totalorder %s210, %s224
      %p226 = scmp.eq.s32.totalorder %s48, 0
      %p227 = por %p225, %p226
      %s229 = sadd.s32 %s228, 1
      %p232 = scmp.eq.s32.totalorder %s42, 3
      %p233 = scmp.ne.s32.totalorder %s228, %s230
      %p234 = scmp.eq.s32.totalorder %s42, 0
      %p235 = por %p233, %p234
      %p236 = scmp.ne.s32.totalorder %s228, %s230
      %p237 = scmp.eq.s32.totalorder %s47, 3
      %p238 = por %p236, %p237
      %p239 = scmp.ne.s32.totalorder %s230, %s231
      %p240 = scmp.eq.s32.totalorder %s47, 0
      %p241 = por %p239, %p240
      %p242 = scmp.ne.s32.totalorder %s230, %s231
      %p243 = scmp.eq.s32.totalorder %s48, 3
      %p244 = por %p242, %p243
      %p246 = scmp.ne.s32.totalorder %s231, %s245
      %p247 = scmp.eq.s32.totalorder %s48, 0
      %p248 = por %p246, %p247
      %s250 = sadd.s32 %s249, 1
      %p253 = scmp.eq.s32.totalorder %s42, 3
      %p254 = scmp.ne.s32.totalorder %s249, %s251
      %p255 = scmp.eq.s32.totalorder %s42, 0
      %p256 = por %p254, %p255
      %p257 = scmp.ne.s32.totalorder %s249, %s251
      %p258 = scmp.eq.s32.totalorder %s47, 3
      %p259 = por %p257, %p258
      %p260 = scmp.ne.s32.totalorder %s251, %s252
      %p261 = scmp.eq.s32.totalorder %s47, 0
      %p262 = por %p260, %p261
      %p263 = scmp.ne.s32.totalorder %s251, %s252
      %p264 = scmp.eq.s32.totalorder %s48, 3
      %p265 = por %p263, %p264
      %p267 = scmp.ne.s32.totalorder %s252, %s266
      %p268 = scmp.eq.s32.totalorder %s48, 0
      %p269 = por %p267, %p268
      %s271 = sadd.s32 %s270, 1
      %p274 = scmp.eq.s32.totalorder %s42, 3
      %p275 = scmp.ne.s32.totalorder %s270, %s272
      %p276 = scmp.eq.s32.totalorder %s42, 0
      %p277 = por %p275, %p276
      %p278 = scmp.ne.s32.totalorder %s270, %s272
      %p279 = scmp.eq.s32.totalorder %s47, 3
      %p280 = por %p278, %p279
      %p281 = scmp.ne.s32.totalorder %s272, %s273
      %p282 = scmp.eq.s32.totalorder %s47, 0
      %p283 = por %p281, %p282
      %p284 = scmp.ne.s32.totalorder %s272, %s273
      %p285 = scmp.eq.s32.totalorder %s48, 3
      %p286 = por %p284, %p285
      %p288 = scmp.ne.s32.totalorder %s273, %s287
      %p289 = scmp.eq.s32.totalorder %s48, 0
      %p290 = por %p288, %p289
      %s291 = ssub.s32 %s49, %s61
      %s292 = ssub.s32 %s50, %s57
      %s293 = sor.u32 %s291, %s292
      %p294 = scmp.eq.s32.totalorder %s293, 0
      %s296 = sadd.s32 %s295, 1
      %s297 = scalar_select %p294, %s295, %s296
      %p300 = pneg %p294
      %p301 = scmp.eq.s32.totalorder %s42, 3
      %p302 = por %p300, %p301
      %p303 = scmp.ne.s32.totalorder %s295, %s298
      %p304 = scmp.eq.s32.totalorder %s42, 0
      %p305 = por %p303, %p304
      %p306 = scmp.ne.s32.totalorder %s295, %s298
      %p307 = scmp.eq.s32.totalorder %s47, 3
      %p308 = por %p306, %p307
      %p309 = scmp.ne.s32.totalorder %s298, %s299
      %p310 = scmp.eq.s32.totalorder %s47, 0
      %p311 = por %p309, %p310
      %p312 = scmp.ne.s32.totalorder %s298, %s299
      %p313 = scmp.eq.s32.totalorder %s48, 3
      %p314 = por %p312, %p313
      %p316 = scmp.ne.s32.totalorder %s299, %s315
      %p317 = scmp.eq.s32.totalorder %s48, 0
      %p318 = por %p316, %p317
      %s319 = ssub.s32 %s49, %s61
      %s320 = ssub.s32 %s50, %s57
      %s321 = sor.u32 %s319, %s320
      %p322 = scmp.eq.s32.totalorder %s321, 0
      %s324 = sadd.s32 %s323, 1
      %s325 = scalar_select %p322, %s323, %s324
      %p328 = pneg %p322
      %p329 = scmp.eq.s32.totalorder %s42, 3
      %p330 = por %p328, %p329
      %p331 = scmp.ne.s32.totalorder %s323, %s326
      %p332 = scmp.eq.s32.totalorder %s42, 0
      %p333 = por %p331, %p332
      %p334 = scmp.ne.s32.totalorder %s323, %s326
      %p335 = scmp.eq.s32.totalorder %s47, 3
      %p336 = por %p334, %p335
      %p337 = scmp.ne.s32.totalorder %s326, %s327
      %p338 = scmp.eq.s32.totalorder %s47, 0
      %p339 = por %p337, %p338
      %p340 = scmp.ne.s32.totalorder %s326, %s327
      %p341 = scmp.eq.s32.totalorder %s48, 3
      %p342 = por %p340, %p341
      %p344 = scmp.ne.s32.totalorder %s327, %s343
      %p345 = scmp.eq.s32.totalorder %s48, 0
      %p346 = por %p344, %p345
      %s347 = ssub.s32 %s49, %s61
      %s348 = ssub.s32 %s50, %s57
      %s349 = sor.u32 %s347, %s348
      %p350 = scmp.eq.s32.totalorder %s349, 0
      %s352 = sadd.s32 %s351, 1
      %s353 = scalar_select %p350, %s351, %s352
      %p356 = pneg %p350
      %p357 = scmp.eq.s32.totalorder %s42, 3
      %p358 = por %p356, %p357
      %p359 = scmp.ne.s32.totalorder %s351, %s354
      %p360 = scmp.eq.s32.totalorder %s42, 0
      %p361 = por %p359, %p360
      %p362 = scmp.ne.s32.totalorder %s351, %s354
      %p363 = scmp.eq.s32.totalorder %s47, 3
      %p364 = por %p362, %p363
      %p365 = scmp.ne.s32.totalorder %s354, %s355
      %p366 = scmp.eq.s32.totalorder %s47, 0
      %p367 = por %p365, %p366
      %p368 = scmp.ne.s32.totalorder %s354, %s355
      %p369 = scmp.eq.s32.totalorder %s48, 3
      %p370 = por %p368, %p369
      %p372 = scmp.ne.s32.totalorder %s355, %s371
      %p373 = scmp.eq.s32.totalorder %s48, 0
      %p374 = por %p372, %p373
      %s375 = ssub.s32 %s49, %s61
      %s376 = ssub.s32 %s50, %s57
      %s377 = sor.u32 %s375, %s376
      %p378 = scmp.eq.s32.totalorder %s377, 0
      %s380 = sadd.s32 %s379, 1
      %s381 = scalar_select %p378, %s379, %s380
      %p384 = pneg %p378
      %p385 = scmp.eq.s32.totalorder %s42, 3
      %p386 = por %p384, %p385
      %p387 = scmp.ne.s32.totalorder %s379, %s382
      %p388 = scmp.eq.s32.totalorder %s42, 0
      %p389 = por %p387, %p388
      %p390 = scmp.ne.s32.totalorder %s379, %s382
      %p391 = scmp.eq.s32.totalorder %s47, 3
      %p392 = por %p390, %p391
      %p393 = scmp.ne.s32.totalorder %s382, %s383
      %p394 = scmp.eq.s32.totalorder %s47, 0
      %p395 = por %p393, %p394
      %p396 = scmp.ne.s32.totalorder %s382, %s383
      %p397 = scmp.eq.s32.totalorder %s48, 3
      %p398 = por %p396, %p397
      %p400 = scmp.ne.s32.totalorder %s383, %s399
      %p401 = scmp.eq.s32.totalorder %s48, 0
      %p402 = por %p400, %p401
      %s403 = ssub.s32 %s49, %s61
      %s404 = ssub.s32 %s50, %s57
      %s405 = sor.u32 %s403, %s404
      %p406 = scmp.eq.s32.totalorder %s405, 0
      %s408 = sadd.s32 %s407, 1
      %s409 = scalar_select %p406, %s407, %s408
      %p412 = pneg %p406
      %p413 = scmp.eq.s32.totalorder %s42, 3
      %p414 = por %p412, %p413
      %p415 = scmp.ne.s32.totalorder %s407, %s410
      %p416 = scmp.eq.s32.totalorder %s42, 0
      %p417 = por %p415, %p416
      %p418 = scmp.ne.s32.totalorder %s407, %s410
      %p419 = scmp.eq.s32.totalorder %s47, 3
      %p420 = por %p418, %p419
      %p421 = scmp.ne.s32.totalorder %s410, %s411
      %p422 = scmp.eq.s32.totalorder %s47, 0
      %p423 = por %p421, %p422
      %p424 = scmp.ne.s32.totalorder %s410, %s411
      %p425 = scmp.eq.s32.totalorder %s48, 3
      %p426 = por %p424, %p425
      %p428 = scmp.ne.s32.totalorder %s411, %s427
      %p429 = scmp.eq.s32.totalorder %s48, 0
      %p430 = por %p428, %p429
      %s431 = ssub.s32 %s49, %s61
      %s432 = ssub.s32 %s50, %s57
      %s433 = sor.u32 %s431, %s432
      %p434 = scmp.eq.s32.totalorder %s433, 0
      %s436 = sadd.s32 %s435, 1
      %s437 = scalar_select %p434, %s435, %s436
      %p440 = pneg %p434
      %p441 = scmp.eq.s32.totalorder %s42, 3
      %p442 = por %p440, %p441
      %p443 = scmp.ne.s32.totalorder %s435, %s438
      %p444 = scmp.eq.s32.totalorder %s42, 0
      %p445 = por %p443, %p444
      %p446 = scmp.ne.s32.totalorder %s435, %s438
      %p447 = scmp.eq.s32.totalorder %s47, 3
      %p448 = por %p446, %p447
      %p449 = scmp.ne.s32.totalorder %s438, %s439
      %p450 = scmp.eq.s32.totalorder %s47, 0
      %p451 = por %p449, %p450
      %p452 = scmp.ne.s32.totalorder %s438, %s439
      %p453 = scmp.eq.s32.totalorder %s48, 3
      %p454 = por %p452, %p453
      %p456 = scmp.ne.s32.totalorder %s439, %s455
      %p457 = scmp.eq.s32.totalorder %s48, 0
      %p458 = por %p456, %p457
      %p459 = scmp.le.s32.totalorder 1, %s42
      %p460 = scmp.lt.s32.totalorder %s42, 5
      %p461 = pnand %p459, %p460
      %p462 = pneg %p461
      // Predicated region
      $region9: #{tpu_custom_call.1} parent=5 // pred_check
        _
      $region10: #{tpu_custom_call.1} parent=5 // pred_check_branch
        %464 = sbr.rel (%p461) target = $region12
      $region11: #{tpu_custom_call.1} parent=5 // pred_region
        %s465 = ssub.s32 %s42, 1
        // Predicated region
        $region13: #{tpu_custom_call.1} parent=11 // pred_check
          %p466 = pneg %p157
        $region14: #{tpu_custom_call.1} parent=11 // pred_check_branch
          %468 = sbr.rel (%p466) target = $region16
        $region15: #{tpu_custom_call.1} parent=11 // pred_region
          _
        $region16: #{tpu_custom_call.1} parent=11 // pred_fallthru
          _
        // Predicated region
        $region17: #{tpu_custom_call.1} parent=11 // pred_check
          %p469 = pneg %p178
        $region18: #{tpu_custom_call.1} parent=11 // pred_check_branch
          %471 = sbr.rel (%p469) target = $region20
        $region19: #{tpu_custom_call.1} parent=11 // pred_region
          _
        $region20: #{tpu_custom_call.1} parent=11 // pred_fallthru
          _
        // Predicated region
        $region21: #{tpu_custom_call.1} parent=11 // pred_check
          %p472 = pneg %p199
        $region22: #{tpu_custom_call.1} parent=11 // pred_check_branch
          %474 = sbr.rel (%p472) target = $region24
        $region23: #{tpu_custom_call.1} parent=11 // pred_region
          _
        $region24: #{tpu_custom_call.1} parent=11 // pred_fallthru
          _
        // Predicated region
        $region25: #{tpu_custom_call.1} parent=11 // pred_check
          %p475 = pneg %p220
        $region26: #{tpu_custom_call.1} parent=11 // pred_check_branch
          %477 = sbr.rel (%p475) target = $region28
        $region27: #{tpu_custom_call.1} parent=11 // pred_region
          _
        $region28: #{tpu_custom_call.1} parent=11 // pred_fallthru
          _
        // Predicated region
        $region29: #{tpu_custom_call.1} parent=11 // pred_check
          %p478 = pneg %p241
        $region30: #{tpu_custom_call.1} parent=11 // pred_check_branch
          %480 = sbr.rel (%p478) target = $region32
        $region31: #{tpu_custom_call.1} parent=11 // pred_region
          _
        $region32: #{tpu_custom_call.1} parent=11 // pred_fallthru
          _
        // Predicated region
        $region33: #{tpu_custom_call.1} parent=11 // pred_check
          %p481 = pneg %p262
        $region34: #{tpu_custom_call.1} parent=11 // pred_check_branch
          %483 = sbr.rel (%p481) target = $region36
        $region35: #{tpu_custom_call.1} parent=11 // pred_region
          _
        $region36: #{tpu_custom_call.1} parent=11 // pred_fallthru
          _
        // Predicated region
        $region37: #{tpu_custom_call.1} parent=11 // pred_check
          %p484 = pneg %p283
        $region38: #{tpu_custom_call.1} parent=11 // pred_check_branch
          %486 = sbr.rel (%p484) target = $region40
        $region39: #{tpu_custom_call.1} parent=11 // pred_region
          _
        $region40: #{tpu_custom_call.1} parent=11 // pred_fallthru
          _
      $region12: #{tpu_custom_call.1} parent=5 // pred_fallthru
        _
      %p487 = scmp.lt.s32.totalorder %s42, 4
      // Predicated region
      $region41: #{tpu_custom_call.1} parent=5 // pred_check
        %p488 = pneg %p487
      $region42: #{tpu_custom_call.1} parent=5 // pred_check_branch
        %490 = sbr.rel (%p488) target = $region44
      $region43: #{tpu_custom_call.1} parent=5 // pred_region
        // Predicated region
        $region45: #{tpu_custom_call.1} parent=43 // pred_check
          %p491 = pneg %p76
        $region46: #{tpu_custom_call.1} parent=43 // pred_check_branch
          %493 = sbr.rel (%p491) target = $region48
        $region47: #{tpu_custom_call.1} parent=43 // pred_region
          %p494 = scmp.lt.s32.totalorder %s49, 1
          %s495 = scalar_select %p494, %s49, 1
          %p496 = scmp.lt.s32.totalorder %s50, 1
          %s497 = scalar_select %p496, %s50, 1
          %s498 = smul.addr %s495, 2
          %s499 = sadd.s32 %s497, %s498
          %s500 = smul.addr %s499, 8
          %s501 = scalar_lea.vmem %s0, %s500
        $region48: #{tpu_custom_call.1} parent=43 // pred_fallthru
          _
        // Predicated region
        $region49: #{tpu_custom_call.1} parent=43 // pred_check
          %p502 = pneg %p104
        $region50: #{tpu_custom_call.1} parent=43 // pred_check_branch
          %504 = sbr.rel (%p502) target = $region52
        $region51: #{tpu_custom_call.1} parent=43 // pred_region
          %p505 = scmp.lt.s32.totalorder %s49, 1
          %s506 = scalar_select %p505, %s49, 1
          %p507 = scmp.lt.s32.totalorder %s50, 1
          %s508 = scalar_select %p507, %s50, 1
          %s509 = smul.addr %s506, 2
          %s510 = sadd.s32 %s508, %s509
          %s511 = smul.addr %s510, 8
          %s512 = scalar_lea.vmem %s1, %s511
        $region52: #{tpu_custom_call.1} parent=43 // pred_fallthru
          _
        // Predicated region
        $region53: #{tpu_custom_call.1} parent=43 // pred_check
          %p513 = pneg %p130
        $region54: #{tpu_custom_call.1} parent=43 // pred_check_branch
          %515 = sbr.rel (%p513) target = $region56
        $region55: #{tpu_custom_call.1} parent=43 // pred_region
          %p516 = scmp.lt.s32.totalorder %s49, 1
          %s517 = scalar_select %p516, %s49, 1
          %s518 = smul.addr %s517, 8
          %s519 = scalar_lea.vmem %s2, %s518
        $region56: #{tpu_custom_call.1} parent=43 // pred_fallthru
          _
      $region44: #{tpu_custom_call.1} parent=5 // pred_fallthru
        _
      %p520 = scmp.le.s32.totalorder 1, %s42
      %p521 = scmp.lt.s32.totalorder %s42, 5
      %p522 = pnand %p520, %p521
      %p523 = pneg %p522
      // Predicated region
      $region57: #{tpu_custom_call.1} parent=5 // pred_check
        _
      $region58: #{tpu_custom_call.1} parent=5 // pred_check_branch
        %525 = sbr.rel (%p522) target = $region60
      $region59: #{tpu_custom_call.1} parent=5 // pred_region
        %s526 = ssub.s32 %s42, 1
        %p527 = scmp.lt.s32.totalorder %s51, 1
        %s528 = scalar_select %p527, %s51, 1
        %p529 = scmp.lt.s32.totalorder %s52, 1
        %s530 = scalar_select %p529, %s52, 1
        %s531 = smul.addr %s528, 2
        %s532 = sadd.s32 %s530, %s531
        %s533 = smul.addr %s532, 8
        %s534 = scalar_lea.vmem %s0, %s533
        %p535 = pneg %p82
        %p536 = pneg %p79
        %p537 = scmp.lt.s32.totalorder %s51, 1
        %s538 = scalar_select %p537, %s51, 1
        %p539 = scmp.lt.s32.totalorder %s52, 1
        %s540 = scalar_select %p539, %s52, 1
        %s541 = smul.addr %s538, 2
        %s542 = sadd.s32 %s540, %s541
        %s543 = smul.addr %s542, 8
        %s544 = scalar_lea.vmem %s1, %s543
        %p545 = pneg %p110
        %p546 = pneg %p107
        %p547 = scmp.lt.s32.totalorder %s51, 1
        %s548 = scalar_select %p547, %s51, 1
        %s549 = smul.addr %s548, 8
        %s550 = scalar_lea.vmem %s2, %s549
        %p551 = pneg %p136
        %p552 = pneg %p133
        %p553 = pneg %p157
        %p554 = pneg %p154
        %p555 = pneg %p178
        %p556 = pneg %p175
        %p557 = pneg %p199
        %p558 = pneg %p196
        %p559 = pneg %p220
        %p560 = pneg %p217
        %p561 = pneg %p241
        %p562 = pneg %p238
        %p563 = pneg %p262
        %p564 = pneg %p259
        %p565 = pneg %p283
        %p566 = pneg %p280
        %p567 = pneg %p311
        %p568 = pneg %p308
        %s569 = sand.u32 %s298, 1
        %s570 = scalar_lea.sflag [#allocation7], %s569
        %s571 = sand.u32 %s298, 1
        %s572 = smul.addr %s571, 8
        %s573 = scalar_lea.vmem [#allocation6], %s572
        %p574 = pneg %p339
        %p575 = pneg %p336
        %s576 = sand.u32 %s47, 1
        %s577 = scalar_lea.sflag [#allocation9], %s576
        %s578 = sand.u32 %s326, 1
        %s579 = smul.addr %s578, 4
        %s580 = scalar_lea.vmem [#allocation8], %s579
        %p581 = pneg %p367
        %p582 = pneg %p364
        %s583 = sand.u32 %s47, 1
        %s584 = scalar_lea.sflag [#allocation9], %s583
        %s585 = sand.u32 %s354, 1
        %s586 = scalar_lea.vmem [#allocation10], %s585
        %p587 = pneg %p395
        %p588 = pneg %p392
        %s589 = sand.u32 %s47, 1
        %s590 = scalar_lea.sflag [#allocation12], %s589
        %s591 = sand.u32 %s382, 1
        %s592 = scalar_lea.vmem [#allocation11], %s591
        %p593 = pneg %p423
        %p594 = pneg %p420
        %s595 = sand.u32 %s47, 1
        %s596 = scalar_lea.sflag [#allocation12], %s595
        %s597 = sand.u32 %s410, 1
        %s598 = scalar_lea.vmem [#allocation13], %s597
        %p599 = pneg %p451
        %p600 = pneg %p448
        %s601 = sand.u32 %s438, 1
        %s602 = scalar_lea.sflag [#allocation15], %s601
        %s603 = sand.u32 %s438, 1
        %s604 = smul.addr %s603, 4
        %s605 = scalar_lea.vmem [#allocation14], %s604
        %p606 = scmp.lt.s32.totalorder %s51, 1
        %s607 = scalar_select %p606, %s51, 1
        %p608 = scmp.lt.s32.totalorder %s52, 1
        %s609 = scalar_select %p608, %s52, 1
        %s610 = smul.addr %s607, 2
        %s611 = sadd.s32 %s609, %s610
        %s612 = smul.addr %s611, 8
        %s613 = scalar_lea.vmem %s0, %s612
        %p614 = scmp.lt.s32.totalorder %s51, 1
        %s615 = scalar_select %p614, %s51, 1
        %p616 = scmp.lt.s32.totalorder %s52, 1
        %s617 = scalar_select %p616, %s52, 1
        %s618 = smul.addr %s615, 2
        %s619 = sadd.s32 %s617, %s618
        %s620 = smul.addr %s619, 8
        %s621 = scalar_lea.vmem %s1, %s620
        %p622 = scmp.lt.s32.totalorder %s51, 1
        %s623 = scalar_select %p622, %s51, 1
        %s624 = smul.addr %s623, 8
        %s625 = scalar_lea.vmem %s2, %s624
        %v627 = vld [vmem:[%s613] sm:$0xff]
        %v628 = vpack.c.bf16 %v627, %v627
        %v629 = vld [vmem:[%s3] sm:$0xf]
        %v630 = vld [vmem:[%s3 + $0x4] sm:$0xf]
        %v633 = vunpack.c.l.b16 %v629
        %v634 = vunpack.c.l.b16 %v630
        %v635 = vpack.c.b16 %v634, %v633
        %vm636 = vcmask 64512
        %v638 = vsel %vm636, %v635, 0
        %vm640 = vcmask 1043456
        %v642 = vsel %vm640, %v628, 0
        %644 = vmatprep.subr.bf16.mxu0 0
        %645 = vmatpush1.bf16.msra.mxu0 %v642
        %646 = vmatprep.subr.bf16.mxu0 0
        %647 = vmatpush1.bf16.msra.mxu0 0
        %648 = vmatprep.subr.bf16.mxu0 0
        %649 = vmatpush1.bf16.msra.mxu0 0
        %650 = vmatprep.subr.bf16.mxu0 0
        %651 = vmatpush1.bf16.msra.mxu0 0
        %652 = vmatprep.subr.bf16.mxu0 0
        %653 = vmatpush1.bf16.msra.mxu0 0
        %654 = vmatprep.subr.bf16.mxu0 0
        %655 = vmatpush1.bf16.msra.mxu0 0
        %656 = vmatprep.subr.bf16.mxu0 0
        %657 = vmatpush1.bf16.msra.mxu0 0
        %658 = vmatprep.subr.bf16.mxu0 0
        %659 = vmatpush1.bf16.msra.mxu0 0
        %660 = vmatprep.subr.bf16.mxu0 0
        %661 = vmatpush1.bf16.msra.mxu0 0
        %662 = vmatprep.subr.bf16.mxu0 0
        %663 = vmatpush1.bf16.msra.mxu0 0
        %664 = vmatprep.subr.bf16.mxu0 0
        %665 = vmatpush1.bf16.msra.mxu0 0
        %666 = vmatprep.subr.bf16.mxu0 0
        %667 = vmatpush1.bf16.msra.mxu0 0
        %668 = vmatprep.subr.bf16.mxu0 0
        %669 = vmatpush1.bf16.msra.mxu0 0
        %670 = vmatprep.subr.bf16.mxu0 0
        %671 = vmatpush1.bf16.msra.mxu0 0
        %672 = vmatprep.subr.bf16.mxu0 0
        %673 = vmatpush1.bf16.msra.mxu0 0
        %674 = vmatprep.subr.bf16.mxu0 0
        %675 = vmatpush1.bf16.msra.mxu0 0
        %676 = vmatprep.mubr.bf16.mxu0 0
        %677 = vmatmul.mubr.bf16.gmra.mrb[0].mxu0 %v638
        %v678 = vpop.f32.mrb[0].mxu0
        %v679 = vadd.f32 0.0, %v678
        %v680 = vpop.f32.mrb[0].mxu0
        %v681 = vpop.f32.mrb[0].mxu0
        %v682 = vadd.f32 0.0, %v681
        %v683 = vpop.f32.mrb[0].mxu0
        %684 = vdwg.mxu0
        %v685 = vld [vmem:[%s4] sm:$0xff]
        %687 = vset.pattern.permute.xlu0 0
        %688 = vperm.xlu0 %687, %v685
        %v689 = vpop.permute.xlu0 %688
        %v691 = vadd.f32 %v679, %v689
        %v692 = vld [vmem:[%s5] sm:$0xff]
        %694 = vset.pattern.permute.xlu0 0
        %695 = vperm.xlu0 %694, %v692
        %v696 = vpop.permute.xlu0 %695
        %v698 = vadd.f32 %v682, %v696
        %v699 = vld [vmem:[%s625] sm:$0xff]
        %701 = vset.pattern.permute.xlu0 0
        %702 = vperm.xlu0 %701, %v699
        %v703 = vpop.permute.xlu0 %702
        %v705 = vmul.f32 %v703, %v691
        %v706 = vrot.slane %v705, 4
        %v707 = vadd.f32 %v705, %v706
        %v708 = vrot.slane %v707, 2
        %v709 = vadd.f32 %v707, %v708
        %v710 = vrot.slane %v709, 1
        %v711 = vadd.f32 %v709, %v710
        %712 = vst [vmem:[%s586] sm:$0x1] %v711
        %v713 = vrot.slane %v627, 4
        %v714 = vmax.f32 %v627, %v713
        %v715 = vrot.slane %v714, 2
        %v716 = vmax.f32 %v714, %v715
        %v717 = vrot.slane %v716, 1
        %v718 = vmax.f32 %v716, %v717
        %v719 = vld [vmem:[%s621] sm:$0xff]
        %v720 = vmul.f32 %v627, %v719
        %v721 = vrot.slane %v720, 4
        %v722 = vmax.f32 %v720, %v721
        %v723 = vrot.slane %v722, 2
        %v724 = vmax.f32 %v722, %v723
        %v725 = vrot.slane %v724, 1
        %v726 = vmax.f32 %v724, %v725
        %v727 = vld [vmem:[#allocation2] sm:$0x1]
        %729 = vset.pattern.permute.xlu0 0
        %730 = vperm.xlu0 %729, %v727
        %v731 = vpop.permute.xlu0 %730
        %v733 = vlaneseq
        %v734 = vshrl.u32 %v733, 7
        %v735 = vsub.s32 0, %v734
        %v736 = vrot.slane %v731, %v735
        %v737 = vmul.f32 %v736, %v718
        %v738 = vld [vmem:[#allocation3] sm:$0x1]
        %740 = vset.pattern.permute.xlu0 0
        %741 = vperm.xlu0 %740, %v738
        %v742 = vpop.permute.xlu0 %741
        %v744 = vlaneseq
        %v745 = vshrl.u32 %v744, 7
        %v746 = vsub.s32 0, %v745
        %v747 = vrot.slane %v742, %v746
        %v748 = vadd.f32 %v737, %v747
        %749 = vst [vmem:[%s592] sm:$0x1] %v748
        %v750 = vld [vmem:[#allocation4] sm:$0x1]
        %752 = vset.pattern.permute.xlu0 0
        %753 = vperm.xlu0 %752, %v750
        %v754 = vpop.permute.xlu0 %753
        %v756 = vlaneseq
        %v757 = vshrl.u32 %v756, 7
        %v758 = vsub.s32 0, %v757
        %v759 = vrot.slane %v754, %v758
        %v760 = vmul.f32 %v759, %v726
        %v761 = vld [vmem:[#allocation5] sm:$0x1]
        %763 = vset.pattern.permute.xlu0 0
        %764 = vperm.xlu0 %763, %v761
        %v765 = vpop.permute.xlu0 %764
        %v767 = vlaneseq
        %v768 = vshrl.u32 %v767, 7
        %v769 = vsub.s32 0, %v768
        %v770 = vrot.slane %v765, %v769
        %v771 = vadd.f32 %v760, %v770
        %772 = vst [vmem:[%s598] sm:$0x1] %v771
        %773 = vst [vmem:[%s573] sm:$0xff] %v691
        %v774 = vpack.c.bf16 %v698, %v698
        %775 = vst [vmem:[%s580] sm:$0xf] %v774
        %776 = vst [vmem:[%s605] sm:$0xf] %v628
        %s777 = sand.u32 %s298, 1
        %s778 = scalar_lea.sflag [#allocation7], %s777
        %s779 = sand.u32 %s298, 1
        %s780 = smul.addr %s779, 8
        %s781 = scalar_lea.vmem [#allocation6], %s780
        %s782 = sand.u32 %s47, 1
        %s783 = scalar_lea.sflag [#allocation9], %s782
        %s784 = sand.u32 %s326, 1
        %s785 = smul.addr %s784, 4
        %s786 = scalar_lea.vmem [#allocation8], %s785
        %s787 = sand.u32 %s47, 1
        %s788 = scalar_lea.sflag [#allocation9], %s787
        %s789 = sand.u32 %s354, 1
        %s790 = scalar_lea.vmem [#allocation10], %s789
        %s791 = sand.u32 %s47, 1
        %s792 = scalar_lea.sflag [#allocation12], %s791
        %s793 = sand.u32 %s382, 1
        %s794 = scalar_lea.vmem [#allocation11], %s793
        %s795 = sand.u32 %s47, 1
        %s796 = scalar_lea.sflag [#allocation12], %s795
        %s797 = sand.u32 %s410, 1
        %s798 = scalar_lea.vmem [#allocation13], %s797
        %s799 = sand.u32 %s438, 1
        %s800 = scalar_lea.sflag [#allocation15], %s799
        %s801 = sand.u32 %s438, 1
        %s802 = smul.addr %s801, 4
        %s803 = scalar_lea.vmem [#allocation14], %s802
        // Predicated region
        $region61: #{tpu_custom_call.1} parent=59 // pred_check
          %p804 = pneg %p308
        $region62: #{tpu_custom_call.1} parent=59 // pred_check_branch
          %806 = sbr.rel (%p804) target = $region64
        $region63: #{tpu_custom_call.1} parent=59 // pred_region
          %s808 = ssub.s32 128, 128
          %809 = vsyncadd %s778, %s808
          %s810 = smul.addr %s51, 2
          %s811 = sadd.s32 %s52, %s810
          %s812 = smul.addr %s811, 128
          %s813 = scalar_lea.hbm %s10, %s812
          %s815 = sshll.u32 %s781, 4
          %s816 = int_to_ptr.vmem [resolvable:$true] %s815
          %818 = dma.vmem_to_hbm [thread:$0]  %s816, 128, %s813, %s778
        $region64: #{tpu_custom_call.1} parent=59 // pred_fallthru
          _
        // Predicated region
        $region65: #{tpu_custom_call.1} parent=59 // pred_check
          %p819 = pneg %p336
        $region66: #{tpu_custom_call.1} parent=59 // pred_check_branch
          %821 = sbr.rel (%p819) target = $region68
        $region67: #{tpu_custom_call.1} parent=59 // pred_region
          %s823 = ssub.s32 64, 64
          %824 = vsyncadd %s783, %s823
          %s825 = smul.addr %s51, 2
          %s826 = sadd.s32 %s52, %s825
          %s827 = smul.addr %s826, 64
          %s828 = scalar_lea.hbm %s11, %s827
          %s830 = sshll.u32 %s786, 4
          %s831 = int_to_ptr.vmem [resolvable:$true] %s830
          %833 = dma.vmem_to_hbm [thread:$0]  %s831, 64, %s828, %s783
        $region68: #{tpu_custom_call.1} parent=59 // pred_fallthru
          _
        // Predicated region
        $region69: #{tpu_custom_call.1} parent=59 // pred_check
          %p834 = pneg %p364
        $region70: #{tpu_custom_call.1} parent=59 // pred_check_branch
          %836 = sbr.rel (%p834) target = $region72
        $region71: #{tpu_custom_call.1} parent=59 // pred_region
          %s838 = ssub.s32 16, 16
          %839 = vsyncadd %s788, %s838
          %s840 = smul.addr %s51, 2
          %s841 = sadd.s32 %s52, %s840
          %s842 = smul.addr %s841, 16
          %s843 = scalar_lea.hbm %s12, %s842
          %s845 = sshll.u32 %s790, 4
          %s846 = int_to_ptr.vmem [resolvable:$true] %s845
          %848 = dma.vmem_to_hbm [thread:$0]  %s846, 16, %s843, %s788
        $region72: #{tpu_custom_call.1} parent=59 // pred_fallthru
          _
        // Predicated region
        $region73: #{tpu_custom_call.1} parent=59 // pred_check
          %p849 = pneg %p392
        $region74: #{tpu_custom_call.1} parent=59 // pred_check_branch
          %851 = sbr.rel (%p849) target = $region76
        $region75: #{tpu_custom_call.1} parent=59 // pred_region
          %s853 = ssub.s32 16, 16
          %854 = vsyncadd %s792, %s853
          %s855 = smul.addr %s51, 2
          %s856 = sadd.s32 %s52, %s855
          %s857 = smul.addr %s856, 16
          %s858 = scalar_lea.hbm %s13, %s857
          %s860 = sshll.u32 %s794, 4
          %s861 = int_to_ptr.vmem [resolvable:$true] %s860
          %863 = dma.vmem_to_hbm [thread:$0]  %s861, 16, %s858, %s792
        $region76: #{tpu_custom_call.1} parent=59 // pred_fallthru
          _
        // Predicated region
        $region77: #{tpu_custom_call.1} parent=59 // pred_check
          %p864 = pneg %p420
        $region78: #{tpu_custom_call.1} parent=59 // pred_check_branch
          %866 = sbr.rel (%p864) target = $region80
        $region79: #{tpu_custom_call.1} parent=59 // pred_region
          %s868 = ssub.s32 16, 16
          %869 = vsyncadd %s796, %s868
          %s870 = smul.addr %s51, 2
          %s871 = sadd.s32 %s52, %s870
          %s872 = smul.addr %s871, 16
          %s873 = scalar_lea.hbm %s14, %s872
          %s875 = sshll.u32 %s798, 4
          %s876 = int_to_ptr.vmem [resolvable:$true] %s875
          %878 = dma.vmem_to_hbm [thread:$0]  %s876, 16, %s873, %s796
        $region80: #{tpu_custom_call.1} parent=59 // pred_fallthru
          _
        // Predicated region
        $region81: #{tpu_custom_call.1} parent=59 // pred_check
          %p879 = pneg %p448
        $region82: #{tpu_custom_call.1} parent=59 // pred_check_branch
          %881 = sbr.rel (%p879) target = $region84
        $region83: #{tpu_custom_call.1} parent=59 // pred_region
          %s883 = ssub.s32 64, 64
          %884 = vsyncadd %s800, %s883
          %s885 = smul.addr %s51, 2
          %s886 = sadd.s32 %s52, %s885
          %s887 = smul.addr %s886, 64
          %s888 = scalar_lea.hbm %s15, %s887
          %s890 = sshll.u32 %s803, 4
          %s891 = int_to_ptr.vmem [resolvable:$true] %s890
          %893 = dma.vmem_to_hbm [thread:$0]  %s891, 64, %s888, %s800
        $region84: #{tpu_custom_call.1} parent=59 // pred_fallthru
          _
      $region60: #{tpu_custom_call.1} parent=5 // pred_fallthru
        _
      %p894 = scmp.le.s32.totalorder 2, %s42
      // Predicated region
      $region85: #{tpu_custom_call.1} parent=5 // pred_check
        %p895 = pneg %p894
      $region86: #{tpu_custom_call.1} parent=5 // pred_check_branch
        %897 = sbr.rel (%p895) target = $region88
      $region87: #{tpu_custom_call.1} parent=5 // pred_region
        %s898 = ssub.s32 %s42, 2
        // Predicated region
        $region89: #{tpu_custom_call.1} parent=87 // pred_check
          %p899 = pneg %p314
        $region90: #{tpu_custom_call.1} parent=87 // pred_check_branch
          %901 = sbr.rel (%p899) target = $region92
        $region91: #{tpu_custom_call.1} parent=87 // pred_region
          %s902 = sand.u32 %s299, 1
          %s903 = scalar_lea.sflag [#allocation7], %s902
          %s904 = sand.u32 %s299, 1
          %s905 = smul.addr %s904, 8
          %s906 = scalar_lea.vmem [#allocation6], %s905
          %907 = dma.done %s903, 128
        $region92: #{tpu_custom_call.1} parent=87 // pred_fallthru
          _
        // Predicated region
        $region93: #{tpu_custom_call.1} parent=87 // pred_check
          %p908 = pneg %p342
        $region94: #{tpu_custom_call.1} parent=87 // pred_check_branch
          %910 = sbr.rel (%p908) target = $region96
        $region95: #{tpu_custom_call.1} parent=87 // pred_region
          %s911 = sand.u32 %s48, 1
          %s912 = scalar_lea.sflag [#allocation9], %s911
          %s913 = sand.u32 %s327, 1
          %s914 = smul.addr %s913, 4
          %s915 = scalar_lea.vmem [#allocation8], %s914
          %916 = dma.done %s912, 64
        $region96: #{tpu_custom_call.1} parent=87 // pred_fallthru
          _
        // Predicated region
        $region97: #{tpu_custom_call.1} parent=87 // pred_check
          %p917 = pneg %p370
        $region98: #{tpu_custom_call.1} parent=87 // pred_check_branch
          %919 = sbr.rel (%p917) target = $region100
        $region99: #{tpu_custom_call.1} parent=87 // pred_region
          %s920 = sand.u32 %s48, 1
          %s921 = scalar_lea.sflag [#allocation9], %s920
          %s922 = sand.u32 %s355, 1
          %s923 = scalar_lea.vmem [#allocation10], %s922
          %924 = dma.done %s921, 16
        $region100: #{tpu_custom_call.1} parent=87 // pred_fallthru
          _
        // Predicated region
        $region101: #{tpu_custom_call.1} parent=87 // pred_check
          %p925 = pneg %p398
        $region102: #{tpu_custom_call.1} parent=87 // pred_check_branch
          %927 = sbr.rel (%p925) target = $region104
        $region103: #{tpu_custom_call.1} parent=87 // pred_region
          %s928 = sand.u32 %s48, 1
          %s929 = scalar_lea.sflag [#allocation12], %s928
          %s930 = sand.u32 %s383, 1
          %s931 = scalar_lea.vmem [#allocation11], %s930
          %932 = dma.done %s929, 16
        $region104: #{tpu_custom_call.1} parent=87 // pred_fallthru
          _
        // Predicated region
        $region105: #{tpu_custom_call.1} parent=87 // pred_check
          %p933 = pneg %p426
        $region106: #{tpu_custom_call.1} parent=87 // pred_check_branch
          %935 = sbr.rel (%p933) target = $region108
        $region107: #{tpu_custom_call.1} parent=87 // pred_region
          %s936 = sand.u32 %s48, 1
          %s937 = scalar_lea.sflag [#allocation12], %s936
          %s938 = sand.u32 %s411, 1
          %s939 = scalar_lea.vmem [#allocation13], %s938
          %940 = dma.done %s937, 16
        $region108: #{tpu_custom_call.1} parent=87 // pred_fallthru
          _
        // Predicated region
        $region109: #{tpu_custom_call.1} parent=87 // pred_check
          %p941 = pneg %p454
        $region110: #{tpu_custom_call.1} parent=87 // pred_check_branch
          %943 = sbr.rel (%p941) target = $region112
        $region111: #{tpu_custom_call.1} parent=87 // pred_region
          %s944 = sand.u32 %s439, 1
          %s945 = scalar_lea.sflag [#allocation15], %s944
          %s946 = sand.u32 %s439, 1
          %s947 = smul.addr %s946, 4
          %s948 = scalar_lea.vmem [#allocation14], %s947
          %949 = dma.done %s945, 64
        $region112: #{tpu_custom_call.1} parent=87 // pred_fallthru
          _
      $region88: #{tpu_custom_call.1} parent=5 // pred_fallthru
        _
    $region6: #{tpu_custom_call.1} parent=1 // loop_footer
      %s46 = sadd.s32 1, %s42
    $region7: #{tpu_custom_call.1} parent=1 // loop_footer_branch
      %41 = sbr.rel target = $region3
    $region8: #{tpu_custom_call.1} parent=1 // loop_exit
      _
    %950 = vsyncpa [#allocation7], 1
    %s951 = scalar_lea.sflag [#allocation7], 1
    %952 = vsyncpa %s951, 1
    %953 = vsyncpa [#allocation9], 1
    %s954 = scalar_lea.sflag [#allocation9], 1
    %955 = vsyncpa %s954, 1
    %956 = vsyncpa [#allocation12], 1
    %s957 = scalar_lea.sflag [#allocation12], 1
    %958 = vsyncpa %s957, 1
    %959 = vsyncpa [#allocation15], 1
    %s960 = scalar_lea.sflag [#allocation15], 1
    %961 = vsyncpa %s960, 1

</llo_original>
